<compile_context>
chip_gen: v7x
topology: tpu7x:2x2x1
jax: 0.10.0
libtpu: 0.0.40
codegen_flags: <defaults>
</compile_context>

<pallas_src>
import jax
import jax.numpy as jnp
from jax.experimental import pallas as pl
from jax.experimental.pallas import tpu as pltpu


def _ia3_rescale_kernel(x_ref, w_ref, b_ref, o_ref):
    # x_ref: (tm, n_state)   w_ref, b_ref: (1, n_state)   o_ref: (tm, n_state)
    x = x_ref[...]
    # Mirror torch semantics exactly: the f32 parameter promotes the product to
    # f32, which is cast back to the input dtype, then the bias (cast to the
    # input dtype) is added.
    scaled = (w_ref[...].astype(jnp.float32) * x.astype(jnp.float32)).astype(x.dtype)
    o_ref[...] = scaled + b_ref[...].astype(x.dtype)


def _pick_row_tile(rows: int, n_state: int, itemsize: int) -> int:
    """Pick a row-tile size: ~2 MiB per input block, multiple of 8, <= rows."""
    target_bytes = 2 * 1024 * 1024
    tm = max(8, target_bytes // max(1, n_state * itemsize))
    tm = min(tm, 2048)          # keep double-buffered in+out tiles well under VMEM
    tm = (tm // 8) * 8          # sublane-aligned
    if tm >= rows:
        return rows             # full extent is always a legal block shape
    return max(8, tm)


def ia3_mlp_rescaling_forward(feats_in, mlp_weights, mlp_biases):
    """out = (mlp_weights * feats_in).astype(dtype) + mlp_biases.astype(dtype).

    feats_in:    (..., n_state)  (typically (batch, n_ctx, n_state))
    mlp_weights: (n_state,) float32
    mlp_biases:  (n_state,) float32
    """
    orig_shape = feats_in.shape
    n_state = orig_shape[-1]
    rows = 1
    for d in orig_shape[:-1]:
        rows *= d

    x2 = feats_in.reshape(rows, n_state)          # contiguous view, free in XLA
    w2 = mlp_weights.reshape(1, n_state)
    b2 = mlp_biases.reshape(1, n_state)

    itemsize = jnp.dtype(feats_in.dtype).itemsize
    tm = _pick_row_tile(rows, n_state, itemsize)
    grid = (pl.cdiv(rows, tm),)

    cost = pl.CostEstimate(
        flops=2 * rows * n_state,                 # one mul + one add per element
        transcendentals=0,
        bytes_accessed=2 * rows * n_state * itemsize + 2 * n_state * 4,
    )

    out = pl.pallas_call(
        _ia3_rescale_kernel,
        out_shape=jax.ShapeDtypeStruct((rows, n_state), feats_in.dtype),
        grid=grid,
        in_specs=[
            pl.BlockSpec((tm, n_state), lambda i: (i, 0)),   # feats tile (streamed)
            pl.BlockSpec((1, n_state), lambda i: (0, 0)),    # weights (VMEM-resident)
            pl.BlockSpec((1, n_state), lambda i: (0, 0)),    # biases  (VMEM-resident)
        ],
        out_specs=pl.BlockSpec((tm, n_state), lambda i: (i, 0)),
        compiler_params=pltpu.CompilerParams(
            dimension_semantics=("parallel",),
            vmem_limit_bytes=64 * 1024 * 1024,
        ),
        cost_estimate=cost,
    )(x2, w2, b2)

    return out.reshape(orig_shape)


if __name__ == "__main__":
    # Small shapes consistent with the module: (batch, n_ctx, n_state)
    batch, n_ctx, n_state = 2, 8, 32

    key = jax.random.PRNGKey(0)
    kx, kw, kb = jax.random.split(key, 3)

    feats_in = jax.random.normal(kx, (batch, n_ctx, n_state), dtype=jnp.float32)
    # Module initializes weights=1, biases=0; use random values so the check is
    # non-trivial.
    mlp_weights = 1.0 + 0.1 * jax.random.normal(kw, (n_state,), dtype=jnp.float32)
    mlp_biases = 0.1 * jax.random.normal(kb, (n_state,), dtype=jnp.float32)

    fwd = jax.jit(ia3_mlp_rescaling_forward)
    out = fwd(feats_in, mlp_weights, mlp_biases)
    jax.block_until_ready(out)

    # Reference (mirrors the torch forward exactly).
    ref = (mlp_weights * feats_in).astype(feats_in.dtype) + mlp_biases.astype(
        feats_in.dtype
    )

    assert out.shape == feats_in.shape
    assert out.dtype == feats_in.dtype
    assert jnp.allclose(out, ref, atol=1e-6, rtol=1e-6)
    print("KERNEL_OK")
</pallas_src>

<mosaic_0001>
module attributes {stable_mosaic.version = 11 : i64} {
  func.func @_ia3_rescale_kernel(%arg0: i32, %arg1: memref<16x32xf32, #tpu.memory_space<vmem>>, %arg2: memref<1x32xf32, #tpu.memory_space<vmem>>, %arg3: memref<1x32xf32, #tpu.memory_space<vmem>>, %arg4: memref<16x32xf32, #tpu.memory_space<vmem>>) attributes {dimension_semantics = [#tpu.dimension_semantics<parallel>], iteration_bounds = array<i64: 1>, scalar_prefetch = 0 : i64, scratch_operands = 0 : i64, tpu.core_type = #tpu.core_type<tc>, window_params = [{transform_indices = @transform_0, window_bounds = array<i64: 16, 32>}, {pipeline_mode = #tpu.pipeline_mode<synchronous>, transform_indices = @transform_1, window_bounds = array<i64: 1, 32>}, {pipeline_mode = #tpu.pipeline_mode<synchronous>, transform_indices = @transform_2, window_bounds = array<i64: 1, 32>}, {transform_indices = @transform_3, window_bounds = array<i64: 16, 32>}]} {
    %c0 = arith.constant 0 : index
    %c0_0 = arith.constant 0 : index
    %0 = vector.load %arg1[%c0, %c0_0] : memref<16x32xf32, #tpu.memory_space<vmem>>, vector<16x32xf32>
    %c0_1 = arith.constant 0 : index
    %c0_2 = arith.constant 0 : index
    %1 = vector.load %arg2[%c0_1, %c0_2] : memref<1x32xf32, #tpu.memory_space<vmem>>, vector<1x32xf32>
    %2 = vector.broadcast %1 : vector<1x32xf32> to vector<16x32xf32>
    %3 = arith.mulf %2, %0 : vector<16x32xf32>
    %c0_3 = arith.constant 0 : index
    %c0_4 = arith.constant 0 : index
    %4 = vector.load %arg3[%c0_3, %c0_4] : memref<1x32xf32, #tpu.memory_space<vmem>>, vector<1x32xf32>
    %5 = vector.broadcast %4 : vector<1x32xf32> to vector<16x32xf32>
    %6 = arith.addf %3, %5 : vector<16x32xf32>
    %c0_5 = arith.constant 0 : index
    %c0_6 = arith.constant 0 : index
    %7 = vector.load %arg4[%c0_5, %c0_6] : memref<16x32xf32, #tpu.memory_space<vmem>>, vector<16x32xf32>
    tpu.vector_store %arg4[%c0_5, %c0_6], %6 {strides = array<i32>} : memref<16x32xf32, #tpu.memory_space<vmem>>, vector<16x32xf32>,
    return
  }
  func.func @transform_0(%arg0: i32) -> (i32, i32) {
    %c0_i32 = arith.constant 0 : i32
    %c0_i32_0 = arith.constant 0 : i32
    return %arg0, %c0_i32 : i32, i32
  }
  func.func @transform_1(%arg0: i32) -> (i32, i32) {
    %c0_i32 = arith.constant 0 : i32
    %c0_i32_0 = arith.constant 0 : i32
    %c0_i32_1 = arith.constant 0 : i32
    return %c0_i32, %c0_i32_0 : i32, i32
  }
  func.func @transform_2(%arg0: i32) -> (i32, i32) {
    %c0_i32 = arith.constant 0 : i32
    %c0_i32_0 = arith.constant 0 : i32
    %c0_i32_1 = arith.constant 0 : i32
    return %c0_i32, %c0_i32_0 : i32, i32
  }
  func.func @transform_3(%arg0: i32) -> (i32, i32) {
    %c0_i32 = arith.constant 0 : i32
    %c0_i32_0 = arith.constant 0 : i32
    return %arg0, %c0_i32 : i32, i32
  }
}

</mosaic_0001>

<llo_original>
// kernel: ia3_mlp_rescaling_forward.1
$region0: #{ia3_mlp_rescaling_forward.1}
  #allocation0 [shape = 'u32[]', space=smem, size = 0x4, offset = 0x4, fixed_abs, tag = 'smem constant byte address 0x4 - core index']
  #allocation1 [shape = 'u32[144,128]{1,0:T(1,128)}', space=vmem, size = 0x12000, scoped, tag = 'internal scratch']
  %s0 = inlined_call_operand.hbm [shape: f32[16,32], index: 0, kind: input, shape index: {}]
  %s1 = inlined_call_operand.hbm [shape: f32[1,32], index: 1, kind: input, shape index: {}]
  %s2 = inlined_call_operand.hbm [shape: f32[1,32], index: 2, kind: input, shape index: {}]
  %s3 = inlined_call_operand.hbm [shape: f32[16,32], index: 3, kind: output, shape index: {}]
  %s4 = sld [smem:[#allocation0]]
  $region34: #{ia3_mlp_rescaling_forward.1} parent=0
    _
  %s6 = ssub.s32 1, %s4
  %s7 = scalar_select 0, %s6, %s4
  $region1: #{ia3_mlp_rescaling_forward.1} parent=0
    #allocation2 [shape = 'u8[8192]{0}', space=vmem, size = 0x2000, scoped, tag = 'input window, operand 0, single buffered']
    #allocation3 [shape = 's32[1]{0}', space=sflag, size = 0x4, scoped, tag = 'scoped memory for ia3_mlp_rescaling_forward.1']
    #allocation4 [shape = 's32[1]{0}', space=sflag, size = 0x4, scoped, tag = 'scoped memory for ia3_mlp_rescaling_forward.1']
    #allocation5 [shape = 'u8[512]{0}', space=vmem, size = 0x400, scoped, tag = 'input window, operand 1, single buffered']
    #allocation6 [shape = 's32[1]{0}', space=sflag, size = 0x4, scoped, tag = 'scoped memory for ia3_mlp_rescaling_forward.1']
    #allocation7 [shape = 'u8[512]{0}', space=vmem, size = 0x400, scoped, tag = 'input window, operand 2, single buffered']
    #allocation8 [shape = 'u8[8192]{0}', space=vmem, size = 0x2000, scoped, tag = 'output window, operand 0, single buffered']
    %8 = vsyncpa [#allocation3], 0
    %9 = vsyncpa [#allocation6], 0
    %10 = vsyncpa [#allocation4], 0
    // Predicated region
    $region2: #{ia3_mlp_rescaling_forward.1} parent=1 // pred_check
      _
    $region3: #{ia3_mlp_rescaling_forward.1} parent=1 // pred_check_branch
      %12 = sbr.rel (0) target = $region5
    $region4: #{ia3_mlp_rescaling_forward.1} parent=1 // pred_region
      %s14 = ssub.s32 256, 256
      %15 = vsyncadd [#allocation3], %s14
      %s16 = sshll.u32 [#allocation2], 4
      %s17 = int_to_ptr.vmem [resolvable:$true] %s16
      %22 = dma.hbm_to_vmem [thread:$0]  %s0, 256, %s17, [#allocation3], 128, 128, 8
    $region5: #{ia3_mlp_rescaling_forward.1} parent=1 // pred_fallthru
      _
    // Predicated region
    $region6: #{ia3_mlp_rescaling_forward.1} parent=1 // pred_check
      _
    $region7: #{ia3_mlp_rescaling_forward.1} parent=1 // pred_check_branch
      %24 = sbr.rel (0) target = $region9
    $region8: #{ia3_mlp_rescaling_forward.1} parent=1 // pred_region
      %s26 = ssub.s32 16, 16
      %27 = vsyncadd [#allocation6], %s26
      %s29 = sshll.u32 [#allocation5], 4
      %s30 = int_to_ptr.vmem [resolvable:$true] %s29
      %32 = dma.hbm_to_vmem [thread:$0]  %s1, 16, %s30, [#allocation6]
    $region9: #{ia3_mlp_rescaling_forward.1} parent=1 // pred_fallthru
      _
    // Predicated region
    $region10: #{ia3_mlp_rescaling_forward.1} parent=1 // pred_check
      _
    $region11: #{ia3_mlp_rescaling_forward.1} parent=1 // pred_check_branch
      %34 = sbr.rel (0) target = $region13
    $region12: #{ia3_mlp_rescaling_forward.1} parent=1 // pred_region
      %s36 = ssub.s32 16, 16
      %37 = vsyncadd [#allocation6], %s36
      %s39 = sshll.u32 [#allocation7], 4
      %s40 = int_to_ptr.vmem [resolvable:$true] %s39
      %42 = dma.hbm_to_vmem [thread:$0]  %s2, 16, %s40, [#allocation6]
    $region13: #{ia3_mlp_rescaling_forward.1} parent=1 // pred_fallthru
      _
    // Predicated region
    $region14: #{ia3_mlp_rescaling_forward.1} parent=1 // pred_check
      _
    $region15: #{ia3_mlp_rescaling_forward.1} parent=1 // pred_check_branch
      %44 = sbr.rel (0) target = $region17
    $region16: #{ia3_mlp_rescaling_forward.1} parent=1 // pred_region
      %45 = dma.done [#allocation3], 256
    $region17: #{ia3_mlp_rescaling_forward.1} parent=1 // pred_fallthru
      _
    // Predicated region
    $region18: #{ia3_mlp_rescaling_forward.1} parent=1 // pred_check
      _
    $region19: #{ia3_mlp_rescaling_forward.1} parent=1 // pred_check_branch
      %47 = sbr.rel (0) target = $region21
    $region20: #{ia3_mlp_rescaling_forward.1} parent=1 // pred_region
      %48 = dma.done [#allocation6], 16
    $region21: #{ia3_mlp_rescaling_forward.1} parent=1 // pred_fallthru
      _
    // Predicated region
    $region22: #{ia3_mlp_rescaling_forward.1} parent=1 // pred_check
      _
    $region23: #{ia3_mlp_rescaling_forward.1} parent=1 // pred_check_branch
      %50 = sbr.rel (0) target = $region25
    $region24: #{ia3_mlp_rescaling_forward.1} parent=1 // pred_region
      %51 = dma.done [#allocation6], 16
    $region25: #{ia3_mlp_rescaling_forward.1} parent=1 // pred_fallthru
      _
    %v52 = vld [vmem:[#allocation2] sm:$0xff]
    %v53 = vld [vmem:[#allocation2 + $0x8] sm:$0xff]
    %v54 = vld [vmem:[#allocation5] sm:$0x1]
    %v56 = vlaneseq
    %v57 = vshrl.u32 %v56, 7
    %v58 = vsub.s32 0, %v57
    %v59 = vrot.slane %v54, %v58
    %v61 = vmul.f32 %v59, %v52
    %v62 = vmul.f32 %v59, %v53
    %v63 = vld [vmem:[#allocation7] sm:$0x1]
    %v65 = vlaneseq
    %v66 = vshrl.u32 %v65, 7
    %v67 = vsub.s32 0, %v66
    %v68 = vrot.slane %v63, %v67
    %v70 = vadd.f32 %v61, %v68
    %v71 = vadd.f32 %v62, %v68
    %vm72 = vcmask 261120
    %73 = vst.msk [vmem:[#allocation8] sm:$0xff] %vm72, %v70
    %74 = vst.msk [vmem:[#allocation8 + $0x8] sm:$0xff] %vm72, %v71
    // Predicated region
    $region26: #{ia3_mlp_rescaling_forward.1} parent=1 // pred_check
      _
    $region27: #{ia3_mlp_rescaling_forward.1} parent=1 // pred_check_branch
      %76 = sbr.rel (0) target = $region29
    $region28: #{ia3_mlp_rescaling_forward.1} parent=1 // pred_region
      %s78 = ssub.s32 256, 256
      %79 = vsyncadd [#allocation4], %s78
      %s80 = sshll.u32 [#allocation8], 4
      %s81 = int_to_ptr.vmem [resolvable:$true] %s80
      %86 = dma.vmem_to_hbm [thread:$0]  %s81, 256, %s3, [#allocation4], 128, 128, 8
    $region29: #{ia3_mlp_rescaling_forward.1} parent=1 // pred_fallthru
      _
    // Predicated region
    $region30: #{ia3_mlp_rescaling_forward.1} parent=1 // pred_check
      _
    $region31: #{ia3_mlp_rescaling_forward.1} parent=1 // pred_check_branch
      %88 = sbr.rel (0) target = $region33
    $region32: #{ia3_mlp_rescaling_forward.1} parent=1 // pred_region
      %89 = dma.done [#allocation4], 256
    $region33: #{ia3_mlp_rescaling_forward.1} parent=1 // pred_fallthru
      _
    %90 = vsyncpa [#allocation3], 1
    %91 = vsyncpa [#allocation6], 1
    %92 = vsyncpa [#allocation4], 1

</llo_original>
